<compile_context>
chip_gen: v6e
topology: v6e:2x2x1
jax: 0.10.0
libtpu: 0.0.40
codegen_flags: <defaults>
</compile_context>

<pallas_src>
import functools

import numpy as np
import jax
import jax.numpy as jnp
from jax import lax
from jax.experimental import pallas as pl
from jax.experimental.pallas import tpu as pltpu

# ---------------- problem configuration ---------------------------------------
B, C_IN, C_OUT, H, W = 2, 4, 8, 16, 16
KSIZE, STRIDE, PAD = 3, 1, 1
BN_EPS = 1e-5


def _round8(n):
    return (n + 7) // 8 * 8


# ------------------------------- Pallas kernel --------------------------------
def bottleneck_kernel(slab1_ref, w1_ref, b1_ref, g1_ref, bt1_ref,
                      w2_ref, b2_ref, g2_ref, bt2_ref, m_ref,
                      o_ref, slab2_ref,
                      *, ksize, pad, width, length, c_mid, eps):
    """Fused (conv3x3 + training-mode BN + ReLU) x 2 on lane-dense (C, B*H*W) slabs."""

    def bn_relu(y, bias, gamma, beta):
        # Training-mode BatchNorm: per-channel batch statistics over the lane axis
        # (L = B*H*W), biased variance — exactly what nn.BatchNorm2d uses to
        # normalize in its default mode.  All math in f32 (v5e-safe).
        y = y + bias
        mean = jnp.mean(y, axis=1, keepdims=True)
        yc = y - mean
        var = jnp.mean(yc * yc, axis=1, keepdims=True)
        scale = lax.rsqrt(var + eps) * gamma          # EUP rsqrt, per-channel
        return jnp.maximum(yc * scale + beta, 0.0)

    # ---- layer 1: single fused K = 9*C_in_pad matmul on the wrapper-built slab.
    y1 = jnp.dot(w1_ref[...], slab1_ref[...],          # bf16 x bf16 -> f32 acc
                 preferred_element_type=jnp.float32)
    h1 = bn_relu(y1, b1_ref[...], g1_ref[...], bt1_ref[...])

    # ---- layer 2: build the im2col slab for h1 in VMEM scratch.  Rolls go to the
    # XLU slot; the boundary mask is applied exactly once per tap while writing the
    # slab row; stores are static, (8,128)-aligned f32 tile writes that the LLO
    # scheduler can interleave with the surrounding MXU work.
    for t in range(ksize * ksize):                     # unrolled, 9 taps
        dh = t // ksize - pad
        dw = t % ksize - pad
        s = dh * width + dw                            # flat-index offset of tap
        xs = h1 if s == 0 else pltpu.roll(h1, shift=(-s) % length, axis=1)
        slab2_ref[pl.ds(t * c_mid, c_mid), :] = xs * m_ref[t]

    y2 = jnp.dot(w2_ref[...], slab2_ref[...].astype(jnp.bfloat16),
                 preferred_element_type=jnp.float32)
    o_ref[...] = bn_relu(y2, b2_ref[...], g2_ref[...], bt2_ref[...]).astype(o_ref.dtype)


# ------------------------------- wrapper helpers -------------------------------
def _boundary_masks(batch, height, width, ksize, pad):
    """(k*k, B*H*W) f32: 1 where the tap's source pixel lies inside the image.

    Computed from the OUTPUT pixel's in-image row/col, so it also zeroes
    cross-row / cross-batch wrap contributions of the flat-axis roll."""
    L = batch * height * width
    q = np.arange(L)
    hh = (q % (height * width)) // width
    ww = q % width
    masks = np.empty((ksize * ksize, L), np.float32)
    for t in range(ksize * ksize):
        dh, dw = t // ksize - pad, t % ksize - pad
        valid = ((hh + dh >= 0) & (hh + dh < height) &
                 (ww + dw >= 0) & (ww + dw < width))
        masks[t] = valid.astype(np.float32)
    return masks


def _pack_weights(w, c_out_pad, c_in_pad):
    """(C_out, C_in, k, k) -> (C_out_pad, k*k*C_in_pad) bf16, row r = t*C_in_pad + c."""
    c_out, c_in, kh, kw = w.shape
    w = jnp.transpose(w, (2, 3, 0, 1)).reshape(kh * kw, c_out, c_in)
    w = jnp.pad(w, ((0, 0), (0, c_out_pad - c_out), (0, c_in_pad - c_in)))
    w = jnp.transpose(w, (1, 0, 2)).reshape(c_out_pad, kh * kw * c_in_pad)
    return w.astype(jnp.bfloat16)


# ------------------------------- wrapper ---------------------------------------
def bottleneck_block(x, conv1_w, conv1_b, bn1, conv2_w, conv2_b, bn2,
                     *, ksize=KSIZE, stride=STRIDE, pad=PAD, eps=BN_EPS):
    if stride != 1:
        raise NotImplementedError("only stride=1 is supported")
    b, c_in, h, w = x.shape
    c1, c2 = conv1_w.shape[0], conv2_w.shape[0]
    c_in_p, c1_p, c2_p = _round8(c_in), _round8(c1), _round8(c2)
    L = b * h * w
    if L % 128:
        raise NotImplementedError("B*H*W must be a multiple of 128 lanes")

    masks = _boundary_masks(b, h, w, ksize, pad)               # (k*k, L) numpy f32

    # Layer-1 im2col slab built with plain XLA in the wrapper (off the kernel's
    # serial critical path), lane-dense, masked once per tap, cast to bf16.
    x_flat = jnp.transpose(x, (1, 0, 2, 3)).reshape(c_in, L).astype(jnp.float32)
    x_flat = jnp.pad(x_flat, ((0, c_in_p - c_in), (0, 0)))
    rows = []
    for t in range(ksize * ksize):
        dh, dw = t // ksize - pad, t % ksize - pad
        s = dh * w + dw
        xs = x_flat if s == 0 else jnp.roll(x_flat, -s, axis=1)
        rows.append(xs * masks[t][None, :])
    slab1 = jnp.concatenate(rows, axis=0).astype(jnp.bfloat16)  # (k*k*c_in_p, L)

    w1_2d = _pack_weights(conv1_w, c1_p, c_in_p)                # bf16 MXU operands
    w2_2d = _pack_weights(conv2_w, c2_p, c1_p)

    def col(v, n):                                              # per-channel f32 columns
        return jnp.pad(v.astype(jnp.float32), (0, n - v.shape[0])).reshape(n, 1)

    b1c, g1c, bt1c = col(conv1_b, c1_p), col(bn1[0], c1_p), col(bn1[1], c1_p)
    b2c, g2c, bt2c = col(conv2_b, c2_p), col(bn2[0], c2_p), col(bn2[1], c2_p)

    # Masks for the in-kernel layer-2 slab, pre-broadcast over channels so the
    # kernel never materializes a (1,L)->(C,L) broadcast (kept f32 for v5e's VALU).
    masks_b = jnp.asarray(np.repeat(masks[:, None, :], c1_p, axis=1))  # (k*k, c1_p, L)

    flops = 2 * L * ksize * ksize * (c1_p * c_in_p + c2_p * c1_p)
    bytes_accessed = int(slab1.size * 2 + w1_2d.size * 2 + w2_2d.size * 2
                         + masks_b.size * 4 + 6 * max(c1_p, c2_p) * 4 + c2_p * L * 4)

    kernel = functools.partial(bottleneck_kernel, ksize=ksize, pad=pad, width=w,
                               length=L, c_mid=c1_p, eps=eps)
    out = pl.pallas_call(
        kernel,
        out_shape=jax.ShapeDtypeStruct((c2_p, L), jnp.float32),
        in_specs=[pl.BlockSpec(memory_space=pltpu.MemorySpace.VMEM)
                  for _ in range(10)],
        out_specs=pl.BlockSpec(memory_space=pltpu.MemorySpace.VMEM),
        scratch_shapes=[pltpu.VMEM((ksize * ksize * c1_p, L), jnp.float32)],
        cost_estimate=pl.CostEstimate(flops=flops,
                                      transcendentals=2 * (c1_p + c2_p),
                                      bytes_accessed=bytes_accessed),
    )(slab1, w1_2d, b1c, g1c, bt1c, w2_2d, b2c, g2c, bt2c, masks_b)

    out = out[:c2].reshape(c2, b, h, w)
    return jnp.transpose(out, (1, 0, 2, 3)).astype(x.dtype)


# ------------------------------ pure-JAX reference -----------------------------
def reference(x, conv1_w, conv1_b, bn1, conv2_w, conv2_b, bn2, eps=BN_EPS):
    def block(z, cw, cb, gamma, beta):
        z = lax.conv_general_dilated(
            z, cw, window_strides=(STRIDE, STRIDE),
            padding=[(PAD, PAD), (PAD, PAD)],
            dimension_numbers=("NCHW", "OIHW", "NCHW"),
            precision=lax.Precision.HIGHEST)
        z = z + cb[None, :, None, None]
        mean = jnp.mean(z, axis=(0, 2, 3), keepdims=True)
        var = jnp.mean(jnp.square(z - mean), axis=(0, 2, 3), keepdims=True)
        z = (z - mean) / jnp.sqrt(var + eps)
        z = z * gamma[None, :, None, None] + beta[None, :, None, None]
        return jnp.maximum(z, 0.0)

    h = block(x, conv1_w, conv1_b, *bn1)
    return block(h, conv2_w, conv2_b, *bn2)


# ---------------------------------- main ----------------------------------------
if __name__ == "__main__":
    key = jax.random.PRNGKey(0)
    ks = jax.random.split(key, 9)

    x = jax.random.normal(ks[0], (B, C_IN, H, W), dtype=jnp.float32)

    conv1_w = 0.2 * jax.random.normal(ks[1], (C_OUT, C_IN, KSIZE, KSIZE), jnp.float32)
    conv1_b = 0.1 * jax.random.normal(ks[2], (C_OUT,), jnp.float32)
    bn1 = (1.0 + 0.1 * jax.random.normal(ks[3], (C_OUT,), jnp.float32),   # gamma
           0.1 * jax.random.normal(ks[4], (C_OUT,), jnp.float32))          # beta

    conv2_w = 0.2 * jax.random.normal(ks[5], (C_OUT, C_OUT, KSIZE, KSIZE), jnp.float32)
    conv2_b = 0.1 * jax.random.normal(ks[6], (C_OUT,), jnp.float32)
    bn2 = (1.0 + 0.1 * jax.random.normal(ks[7], (C_OUT,), jnp.float32),
           0.1 * jax.random.normal(ks[8], (C_OUT,), jnp.float32))

    out = bottleneck_block(x, conv1_w, conv1_b, bn1, conv2_w, conv2_b, bn2)
    out = jax.block_until_ready(out)

    ref = reference(x, conv1_w, conv1_b, bn1, conv2_w, conv2_b, bn2)
    err = jnp.max(jnp.abs(out - ref))
    # Tolerance budgets for bf16 MXU operands (per perf guidance) vs the
    # HIGHEST-precision f32 XLA reference: worst-case ~1e-2..2e-2 on these
    # unit-variance BN outputs.  Structural bugs produce O(0.3+) errors and are
    # still caught.
    if not jnp.allclose(out, ref, atol=3e-2, rtol=3e-2):
        raise AssertionError(f"mismatch: max abs err = {err}")
    print("KERNEL_OK")
</pallas_src>

<mosaic_0001>
module attributes {stable_mosaic.version = 11 : i64} {
  func.func @bottleneck_kernel(%arg0: memref<72x512xbf16, #tpu.memory_space<vmem>>, %arg1: memref<8x72xbf16, #tpu.memory_space<vmem>>, %arg2: memref<8x1xf32, #tpu.memory_space<vmem>>, %arg3: memref<8x1xf32, #tpu.memory_space<vmem>>, %arg4: memref<8x1xf32, #tpu.memory_space<vmem>>, %arg5: memref<8x72xbf16, #tpu.memory_space<vmem>>, %arg6: memref<8x1xf32, #tpu.memory_space<vmem>>, %arg7: memref<8x1xf32, #tpu.memory_space<vmem>>, %arg8: memref<8x1xf32, #tpu.memory_space<vmem>>, %arg9: memref<9x8x512xf32, #tpu.memory_space<vmem>>, %arg10: memref<8x512xf32, #tpu.memory_space<vmem>>, %arg11: memref<72x512xf32, #tpu.memory_space<vmem>>) attributes {dimension_semantics = [], scalar_prefetch = 0 : i64, scratch_operands = 1 : i64, tpu.core_type = #tpu.core_type<tc>} {
    %c0 = arith.constant 0 : index
    %c0_0 = arith.constant 0 : index
    %0 = vector.load %arg1[%c0, %c0_0] : memref<8x72xbf16, #tpu.memory_space<vmem>>, vector<8x72xbf16>
    %c0_1 = arith.constant 0 : index
    %c0_2 = arith.constant 0 : index
    %1 = vector.load %arg0[%c0_1, %c0_2] : memref<72x512xbf16, #tpu.memory_space<vmem>>, vector<72x512xbf16>
    %cst = arith.constant dense<0.000000e+00> : vector<8x512xf32>
    %2 = tpu.matmul %0, %1, %cst {dimension_numbers = #tpu.dot_dimension_numbers<[1], [0], [0], [1], [0, 0, 1, 1], [], []>} : vector<8x72xbf16>, vector<72x512xbf16>, vector<8x512xf32> -> vector<8x512xf32>
    %c0_3 = arith.constant 0 : index
    %c0_4 = arith.constant 0 : index
    %3 = vector.load %arg2[%c0_3, %c0_4] : memref<8x1xf32, #tpu.memory_space<vmem>>, vector<8x1xf32>
    %c0_5 = arith.constant 0 : index
    %c0_6 = arith.constant 0 : index
    %4 = vector.load %arg3[%c0_5, %c0_6] : memref<8x1xf32, #tpu.memory_space<vmem>>, vector<8x1xf32>
    %c0_7 = arith.constant 0 : index
    %c0_8 = arith.constant 0 : index
    %5 = vector.load %arg4[%c0_7, %c0_8] : memref<8x1xf32, #tpu.memory_space<vmem>>, vector<8x1xf32>
    %6 = vector.broadcast %3 : vector<8x1xf32> to vector<8x512xf32>
    %7 = arith.addf %2, %6 : vector<8x512xf32>
    %cst_9 = arith.constant dense<0.000000e+00> : vector<8xf32>
    %8 = vector.multi_reduction <add>, %7, %cst_9 [1] : vector<8x512xf32> to vector<8xf32>
    %9 = vector.shape_cast %8 : vector<8xf32> to vector<8x1xf32>
    %cst_10 = arith.constant 5.120000e+02 : f32
    %10 = vector.broadcast %cst_10 : f32 to vector<8x1xf32>
    %11 = arith.divf %9, %10 : vector<8x1xf32>
    %12 = vector.broadcast %11 : vector<8x1xf32> to vector<8x512xf32>
    %13 = arith.subf %7, %12 : vector<8x512xf32>
    %14 = arith.mulf %13, %13 : vector<8x512xf32>
    %cst_11 = arith.constant dense<0.000000e+00> : vector<8xf32>
    %15 = vector.multi_reduction <add>, %14, %cst_11 [1] : vector<8x512xf32> to vector<8xf32>
    %16 = vector.shape_cast %15 : vector<8xf32> to vector<8x1xf32>
    %cst_12 = arith.constant 5.120000e+02 : f32
    %17 = vector.broadcast %cst_12 : f32 to vector<8x1xf32>
    %18 = arith.divf %16, %17 : vector<8x1xf32>
    %cst_13 = arith.constant 9.99999974E-6 : f32
    %19 = vector.broadcast %cst_13 : f32 to vector<8x1xf32>
    %20 = arith.addf %18, %19 : vector<8x1xf32>
    %21 = math.rsqrt %20 : vector<8x1xf32>
    %22 = arith.mulf %21, %4 : vector<8x1xf32>
    %23 = vector.broadcast %22 : vector<8x1xf32> to vector<8x512xf32>
    %24 = arith.mulf %13, %23 : vector<8x512xf32>
    %25 = vector.broadcast %5 : vector<8x1xf32> to vector<8x512xf32>
    %26 = arith.addf %24, %25 : vector<8x512xf32>
    %cst_14 = arith.constant 0.000000e+00 : f32
    %27 = vector.broadcast %cst_14 : f32 to vector<8x512xf32>
    %28 = arith.maximumf %26, %27 : vector<8x512xf32>
    %c17_i32 = arith.constant 17 : i32
    %29 = tpu.dynamic_rotate %28 by %c17_i32 dim 1 : vector<8x512xf32>, i32 -> vector<8x512xf32>
    %c0_15 = arith.constant 0 : index
    %c0_16 = arith.constant 0 : index
    %c0_17 = arith.constant 0 : index
    %30 = vector.load %arg9[%c0_15, %c0_16, %c0_17] : memref<9x8x512xf32, #tpu.memory_space<vmem>>, vector<1x8x512xf32>
    %31 = vector.shape_cast %30 : vector<1x8x512xf32> to vector<8x512xf32>
    %32 = arith.mulf %29, %31 : vector<8x512xf32>
    %c0_18 = arith.constant 0 : index
    %c0_19 = arith.constant 0 : index
    %33 = vector.load %arg11[%c0_18, %c0_19] : memref<72x512xf32, #tpu.memory_space<vmem>>, vector<8x512xf32>
    tpu.vector_store %arg11[%c0_18, %c0_19], %32 {strides = array<i32>} : memref<72x512xf32, #tpu.memory_space<vmem>>, vector<8x512xf32>,
    %c16_i32 = arith.constant 16 : i32
    %34 = tpu.dynamic_rotate %28 by %c16_i32 dim 1 : vector<8x512xf32>, i32 -> vector<8x512xf32>
    %c1 = arith.constant 1 : index
    %c0_20 = arith.constant 0 : index
    %c0_21 = arith.constant 0 : index
    %35 = vector.load %arg9[%c1, %c0_20, %c0_21] : memref<9x8x512xf32, #tpu.memory_space<vmem>>, vector<1x8x512xf32>
    %36 = vector.shape_cast %35 : vector<1x8x512xf32> to vector<8x512xf32>
    %37 = arith.mulf %34, %36 : vector<8x512xf32>
    %c8 = arith.constant 8 : index
    %c0_22 = arith.constant 0 : index
    %38 = vector.load %arg11[%c8, %c0_22] : memref<72x512xf32, #tpu.memory_space<vmem>>, vector<8x512xf32>
    tpu.vector_store %arg11[%c8, %c0_22], %37 {strides = array<i32>} : memref<72x512xf32, #tpu.memory_space<vmem>>, vector<8x512xf32>,
    %c15_i32 = arith.constant 15 : i32
    %39 = tpu.dynamic_rotate %28 by %c15_i32 dim 1 : vector<8x512xf32>, i32 -> vector<8x512xf32>
    %c2 = arith.constant 2 : index
    %c0_23 = arith.constant 0 : index
    %c0_24 = arith.constant 0 : index
    %40 = vector.load %arg9[%c2, %c0_23, %c0_24] : memref<9x8x512xf32, #tpu.memory_space<vmem>>, vector<1x8x512xf32>
    %41 = vector.shape_cast %40 : vector<1x8x512xf32> to vector<8x512xf32>
    %42 = arith.mulf %39, %41 : vector<8x512xf32>
    %c16 = arith.constant 16 : index
    %c0_25 = arith.constant 0 : index
    %43 = vector.load %arg11[%c16, %c0_25] : memref<72x512xf32, #tpu.memory_space<vmem>>, vector<8x512xf32>
    tpu.vector_store %arg11[%c16, %c0_25], %42 {strides = array<i32>} : memref<72x512xf32, #tpu.memory_space<vmem>>, vector<8x512xf32>,
    %c1_i32 = arith.constant 1 : i32
    %44 = tpu.dynamic_rotate %28 by %c1_i32 dim 1 : vector<8x512xf32>, i32 -> vector<8x512xf32>
    %c3 = arith.constant 3 : index
    %c0_26 = arith.constant 0 : index
    %c0_27 = arith.constant 0 : index
    %45 = vector.load %arg9[%c3, %c0_26, %c0_27] : memref<9x8x512xf32, #tpu.memory_space<vmem>>, vector<1x8x512xf32>
    %46 = vector.shape_cast %45 : vector<1x8x512xf32> to vector<8x512xf32>
    %47 = arith.mulf %44, %46 : vector<8x512xf32>
    %c24 = arith.constant 24 : index
    %c0_28 = arith.constant 0 : index
    %48 = vector.load %arg11[%c24, %c0_28] : memref<72x512xf32, #tpu.memory_space<vmem>>, vector<8x512xf32>
    tpu.vector_store %arg11[%c24, %c0_28], %47 {strides = array<i32>} : memref<72x512xf32, #tpu.memory_space<vmem>>, vector<8x512xf32>,
    %c4 = arith.constant 4 : index
    %c0_29 = arith.constant 0 : index
    %c0_30 = arith.constant 0 : index
    %49 = vector.load %arg9[%c4, %c0_29, %c0_30] : memref<9x8x512xf32, #tpu.memory_space<vmem>>, vector<1x8x512xf32>
    %50 = vector.shape_cast %49 : vector<1x8x512xf32> to vector<8x512xf32>
    %51 = arith.mulf %28, %50 : vector<8x512xf32>
    %c32 = arith.constant 32 : index
    %c0_31 = arith.constant 0 : index
    %52 = vector.load %arg11[%c32, %c0_31] : memref<72x512xf32, #tpu.memory_space<vmem>>, vector<8x512xf32>
    tpu.vector_store %arg11[%c32, %c0_31], %51 {strides = array<i32>} : memref<72x512xf32, #tpu.memory_space<vmem>>, vector<8x512xf32>,
    %c511_i32 = arith.constant 511 : i32
    %53 = tpu.dynamic_rotate %28 by %c511_i32 dim 1 : vector<8x512xf32>, i32 -> vector<8x512xf32>
    %c5 = arith.constant 5 : index
    %c0_32 = arith.constant 0 : index
    %c0_33 = arith.constant 0 : index
    %54 = vector.load %arg9[%c5, %c0_32, %c0_33] : memref<9x8x512xf32, #tpu.memory_space<vmem>>, vector<1x8x512xf32>
    %55 = vector.shape_cast %54 : vector<1x8x512xf32> to vector<8x512xf32>
    %56 = arith.mulf %53, %55 : vector<8x512xf32>
    %c40 = arith.constant 40 : index
    %c0_34 = arith.constant 0 : index
    %57 = vector.load %arg11[%c40, %c0_34] : memref<72x512xf32, #tpu.memory_space<vmem>>, vector<8x512xf32>
    tpu.vector_store %arg11[%c40, %c0_34], %56 {strides = array<i32>} : memref<72x512xf32, #tpu.memory_space<vmem>>, vector<8x512xf32>,
    %c497_i32 = arith.constant 497 : i32
    %58 = tpu.dynamic_rotate %28 by %c497_i32 dim 1 : vector<8x512xf32>, i32 -> vector<8x512xf32>
    %c6 = arith.constant 6 : index
    %c0_35 = arith.constant 0 : index
    %c0_36 = arith.constant 0 : index
    %59 = vector.load %arg9[%c6, %c0_35, %c0_36] : memref<9x8x512xf32, #tpu.memory_space<vmem>>, vector<1x8x512xf32>
    %60 = vector.shape_cast %59 : vector<1x8x512xf32> to vector<8x512xf32>
    %61 = arith.mulf %58, %60 : vector<8x512xf32>
    %c48 = arith.constant 48 : index
    %c0_37 = arith.constant 0 : index
    %62 = vector.load %arg11[%c48, %c0_37] : memref<72x512xf32, #tpu.memory_space<vmem>>, vector<8x512xf32>
    tpu.vector_store %arg11[%c48, %c0_37], %61 {strides = array<i32>} : memref<72x512xf32, #tpu.memory_space<vmem>>, vector<8x512xf32>,
    %c496_i32 = arith.constant 496 : i32
    %63 = tpu.dynamic_rotate %28 by %c496_i32 dim 1 : vector<8x512xf32>, i32 -> vector<8x512xf32>
    %c7 = arith.constant 7 : index
    %c0_38 = arith.constant 0 : index
    %c0_39 = arith.constant 0 : index
    %64 = vector.load %arg9[%c7, %c0_38, %c0_39] : memref<9x8x512xf32, #tpu.memory_space<vmem>>, vector<1x8x512xf32>
    %65 = vector.shape_cast %64 : vector<1x8x512xf32> to vector<8x512xf32>
    %66 = arith.mulf %63, %65 : vector<8x512xf32>
    %c56 = arith.constant 56 : index
    %c0_40 = arith.constant 0 : index
    %67 = vector.load %arg11[%c56, %c0_40] : memref<72x512xf32, #tpu.memory_space<vmem>>, vector<8x512xf32>
    tpu.vector_store %arg11[%c56, %c0_40], %66 {strides = array<i32>} : memref<72x512xf32, #tpu.memory_space<vmem>>, vector<8x512xf32>,
    %c495_i32 = arith.constant 495 : i32
    %68 = tpu.dynamic_rotate %28 by %c495_i32 dim 1 : vector<8x512xf32>, i32 -> vector<8x512xf32>
    %c8_41 = arith.constant 8 : index
    %c0_42 = arith.constant 0 : index
    %c0_43 = arith.constant 0 : index
    %69 = vector.load %arg9[%c8_41, %c0_42, %c0_43] : memref<9x8x512xf32, #tpu.memory_space<vmem>>, vector<1x8x512xf32>
    %70 = vector.shape_cast %69 : vector<1x8x512xf32> to vector<8x512xf32>
    %71 = arith.mulf %68, %70 : vector<8x512xf32>
    %c64 = arith.constant 64 : index
    %c0_44 = arith.constant 0 : index
    %72 = vector.load %arg11[%c64, %c0_44] : memref<72x512xf32, #tpu.memory_space<vmem>>, vector<8x512xf32>
    tpu.vector_store %arg11[%c64, %c0_44], %71 {strides = array<i32>} : memref<72x512xf32, #tpu.memory_space<vmem>>, vector<8x512xf32>,
    %c0_45 = arith.constant 0 : index
    %c0_46 = arith.constant 0 : index
    %73 = vector.load %arg5[%c0_45, %c0_46] : memref<8x72xbf16, #tpu.memory_space<vmem>>, vector<8x72xbf16>
    %c0_47 = arith.constant 0 : index
    %c0_48 = arith.constant 0 : index
    %74 = vector.load %arg11[%c0_47, %c0_48] : memref<72x512xf32, #tpu.memory_space<vmem>>, vector<72x512xf32>
    %75 = arith.truncf %74 : vector<72x512xf32> to vector<72x512xbf16>
    %cst_49 = arith.constant dense<0.000000e+00> : vector<8x512xf32>
    %76 = tpu.matmul %73, %75, %cst_49 {dimension_numbers = #tpu.dot_dimension_numbers<[1], [0], [0], [1], [0, 0, 1, 1], [], []>} : vector<8x72xbf16>, vector<72x512xbf16>, vector<8x512xf32> -> vector<8x512xf32>
    %c0_50 = arith.constant 0 : index
    %c0_51 = arith.constant 0 : index
    %77 = vector.load %arg6[%c0_50, %c0_51] : memref<8x1xf32, #tpu.memory_space<vmem>>, vector<8x1xf32>
    %c0_52 = arith.constant 0 : index
    %c0_53 = arith.constant 0 : index
    %78 = vector.load %arg7[%c0_52, %c0_53] : memref<8x1xf32, #tpu.memory_space<vmem>>, vector<8x1xf32>
    %c0_54 = arith.constant 0 : index
    %c0_55 = arith.constant 0 : index
    %79 = vector.load %arg8[%c0_54, %c0_55] : memref<8x1xf32, #tpu.memory_space<vmem>>, vector<8x1xf32>
    %80 = vector.broadcast %77 : vector<8x1xf32> to vector<8x512xf32>
    %81 = arith.addf %76, %80 : vector<8x512xf32>
    %cst_56 = arith.constant dense<0.000000e+00> : vector<8xf32>
    %82 = vector.multi_reduction <add>, %81, %cst_56 [1] : vector<8x512xf32> to vector<8xf32>
    %83 = vector.shape_cast %82 : vector<8xf32> to vector<8x1xf32>
    %cst_57 = arith.constant 5.120000e+02 : f32
    %84 = vector.broadcast %cst_57 : f32 to vector<8x1xf32>
    %85 = arith.divf %83, %84 : vector<8x1xf32>
    %86 = vector.broadcast %85 : vector<8x1xf32> to vector<8x512xf32>
    %87 = arith.subf %81, %86 : vector<8x512xf32>
    %88 = arith.mulf %87, %87 : vector<8x512xf32>
    %cst_58 = arith.constant dense<0.000000e+00> : vector<8xf32>
    %89 = vector.multi_reduction <add>, %88, %cst_58 [1] : vector<8x512xf32> to vector<8xf32>
    %90 = vector.shape_cast %89 : vector<8xf32> to vector<8x1xf32>
    %cst_59 = arith.constant 5.120000e+02 : f32
    %91 = vector.broadcast %cst_59 : f32 to vector<8x1xf32>
    %92 = arith.divf %90, %91 : vector<8x1xf32>
    %cst_60 = arith.constant 9.99999974E-6 : f32
    %93 = vector.broadcast %cst_60 : f32 to vector<8x1xf32>
    %94 = arith.addf %92, %93 : vector<8x1xf32>
    %95 = math.rsqrt %94 : vector<8x1xf32>
    %96 = arith.mulf %95, %78 : vector<8x1xf32>
    %97 = vector.broadcast %96 : vector<8x1xf32> to vector<8x512xf32>
    %98 = arith.mulf %87, %97 : vector<8x512xf32>
    %99 = vector.broadcast %79 : vector<8x1xf32> to vector<8x512xf32>
    %100 = arith.addf %98, %99 : vector<8x512xf32>
    %cst_61 = arith.constant 0.000000e+00 : f32
    %101 = vector.broadcast %cst_61 : f32 to vector<8x512xf32>
    %102 = arith.maximumf %100, %101 : vector<8x512xf32>
    %c0_62 = arith.constant 0 : index
    %c0_63 = arith.constant 0 : index
    %103 = vector.load %arg10[%c0_62, %c0_63] : memref<8x512xf32, #tpu.memory_space<vmem>>, vector<8x512xf32>
    tpu.vector_store %arg10[%c0_62, %c0_63], %102 {strides = array<i32>} : memref<8x512xf32, #tpu.memory_space<vmem>>, vector<8x512xf32>,
    return
  }
}

</mosaic_0001>

<llo_original>
// kernel: tpu_custom_call.1
$region0: #{tpu_custom_call.1}
  #allocation0 [shape = 'u32[]', space=smem, size = 0x4, offset = 0x4, fixed_abs, tag = 'smem constant byte address 0x4 - core index']
  #allocation1 [shape = 'u32[144,128]{1,0:T(1,128)}', space=vmem, size = 0x12000, scoped, tag = 'internal scratch']
  #allocation2 [shape = 'f32[72,512]{1,0:T(8,128)}', space=vmem, size = 0x24000, scoped, tag = 'scratch operand']
  %s0 = inlined_call_operand.hbm [shape: bf16[72,512], index: 0, kind: input, shape index: {}]
  %s1 = inlined_call_operand.vmem [shape: bf16[8,72], index: 1, kind: input, shape index: {}]
  %s2 = inlined_call_operand.vmem [shape: f32[8,1], index: 2, kind: input, shape index: {}]
  %s3 = inlined_call_operand.vmem [shape: f32[8,1], index: 3, kind: input, shape index: {}]
  %s4 = inlined_call_operand.vmem [shape: f32[8,1], index: 4, kind: input, shape index: {}]
  %s5 = inlined_call_operand.vmem [shape: bf16[8,72], index: 5, kind: input, shape index: {}]
  %s6 = inlined_call_operand.vmem [shape: f32[8,1], index: 6, kind: input, shape index: {}]
  %s7 = inlined_call_operand.vmem [shape: f32[8,1], index: 7, kind: input, shape index: {}]
  %s8 = inlined_call_operand.vmem [shape: f32[8,1], index: 8, kind: input, shape index: {}]
  %s9 = inlined_call_operand.hbm [shape: f32[9,8,512], index: 9, kind: input, shape index: {}]
  %s10 = inlined_call_operand.hbm [shape: f32[8,512], index: 10, kind: output, shape index: {}]
  %s11 = sld [smem:[#allocation0]]
  $region58: #{tpu_custom_call.1} parent=0
    _
  %s13 = ssub.s32 1, %s11
  %s14 = scalar_select 0, %s13, %s11
  $region1: #{tpu_custom_call.1} parent=0
    #allocation3 [shape = 'u8[73728]{0}', space=vmem, size = 0x12000, scoped, tag = 'input window, operand 0, single buffered']
    #allocation4 [shape = 's32[1]{0}', space=sflag, size = 0x4, scoped, tag = 'scoped memory for tpu_custom_call.1']
    #allocation5 [shape = 's32[1]{0}', space=sflag, size = 0x4, scoped, tag = 'scoped memory for tpu_custom_call.1']
    #allocation6 [shape = 'u8[147456]{0}', space=vmem, size = 0x24000, scoped, tag = 'input window, operand 9, single buffered']
    #allocation7 [shape = 's32[1]{0}', space=sflag, size = 0x4, scoped, tag = 'scoped memory for tpu_custom_call.1']
    #allocation8 [shape = 'u8[16384]{0}', space=vmem, size = 0x4000, scoped, tag = 'output window, operand 0, single buffered']
    %15 = vsyncpa [#allocation4], 0
    %16 = vsyncpa [#allocation7], 0
    %17 = vsyncpa [#allocation5], 0
    // Predicated region
    $region2: #{tpu_custom_call.1} parent=1 // pred_check
      _
    $region3: #{tpu_custom_call.1} parent=1 // pred_check_branch
      %19 = sbr.rel (0) target = $region5
    $region4: #{tpu_custom_call.1} parent=1 // pred_region
      %s21 = ssub.s32 2304, 2304
      %22 = vsyncadd [#allocation4], %s21
      %s23 = sshll.u32 [#allocation3], 4
      %s24 = int_to_ptr.vmem [resolvable:$true] %s23
      %29 = dma.hbm_to_vmem [thread:$0]  %s0, 2304, %s24, [#allocation4], 256, 256, 16
    $region5: #{tpu_custom_call.1} parent=1 // pred_fallthru
      _
    // Predicated region
    $region6: #{tpu_custom_call.1} parent=1 // pred_check
      _
    $region7: #{tpu_custom_call.1} parent=1 // pred_check_branch
      %31 = sbr.rel (0) target = $region9
    $region8: #{tpu_custom_call.1} parent=1 // pred_region
      _
    $region9: #{tpu_custom_call.1} parent=1 // pred_fallthru
      _
    // Predicated region
    $region10: #{tpu_custom_call.1} parent=1 // pred_check
      _
    $region11: #{tpu_custom_call.1} parent=1 // pred_check_branch
      %33 = sbr.rel (0) target = $region13
    $region12: #{tpu_custom_call.1} parent=1 // pred_region
      _
    $region13: #{tpu_custom_call.1} parent=1 // pred_fallthru
      _
    // Predicated region
    $region14: #{tpu_custom_call.1} parent=1 // pred_check
      _
    $region15: #{tpu_custom_call.1} parent=1 // pred_check_branch
      %35 = sbr.rel (0) target = $region17
    $region16: #{tpu_custom_call.1} parent=1 // pred_region
      _
    $region17: #{tpu_custom_call.1} parent=1 // pred_fallthru
      _
    // Predicated region
    $region18: #{tpu_custom_call.1} parent=1 // pred_check
      _
    $region19: #{tpu_custom_call.1} parent=1 // pred_check_branch
      %37 = sbr.rel (0) target = $region21
    $region20: #{tpu_custom_call.1} parent=1 // pred_region
      _
    $region21: #{tpu_custom_call.1} parent=1 // pred_fallthru
      _
    // Predicated region
    $region22: #{tpu_custom_call.1} parent=1 // pred_check
      _
    $region23: #{tpu_custom_call.1} parent=1 // pred_check_branch
      %39 = sbr.rel (0) target = $region25
    $region24: #{tpu_custom_call.1} parent=1 // pred_region
      _
    $region25: #{tpu_custom_call.1} parent=1 // pred_fallthru
      _
    // Predicated region
    $region26: #{tpu_custom_call.1} parent=1 // pred_check
      _
    $region27: #{tpu_custom_call.1} parent=1 // pred_check_branch
      %41 = sbr.rel (0) target = $region29
    $region28: #{tpu_custom_call.1} parent=1 // pred_region
      _
    $region29: #{tpu_custom_call.1} parent=1 // pred_fallthru
      _
    // Predicated region
    $region30: #{tpu_custom_call.1} parent=1 // pred_check
      _
    $region31: #{tpu_custom_call.1} parent=1 // pred_check_branch
      %43 = sbr.rel (0) target = $region33
    $region32: #{tpu_custom_call.1} parent=1 // pred_region
      _
    $region33: #{tpu_custom_call.1} parent=1 // pred_fallthru
      _
    // Predicated region
    $region34: #{tpu_custom_call.1} parent=1 // pred_check
      _
    $region35: #{tpu_custom_call.1} parent=1 // pred_check_branch
      %45 = sbr.rel (0) target = $region37
    $region36: #{tpu_custom_call.1} parent=1 // pred_region
      _
    $region37: #{tpu_custom_call.1} parent=1 // pred_fallthru
      _
    // Predicated region
    $region38: #{tpu_custom_call.1} parent=1 // pred_check
      _
    $region39: #{tpu_custom_call.1} parent=1 // pred_check_branch
      %47 = sbr.rel (0) target = $region41
    $region40: #{tpu_custom_call.1} parent=1 // pred_region
      %s49 = ssub.s32 4608, 4608
      %50 = vsyncadd [#allocation7], %s49
      %s51 = sshll.u32 [#allocation6], 4
      %s52 = int_to_ptr.vmem [resolvable:$true] %s51
      %57 = dma.hbm_to_vmem [thread:$0]  %s9, 4608, %s52, [#allocation7], 512, 512, 32
    $region41: #{tpu_custom_call.1} parent=1 // pred_fallthru
      _
    // Predicated region
    $region42: #{tpu_custom_call.1} parent=1 // pred_check
      _
    $region43: #{tpu_custom_call.1} parent=1 // pred_check_branch
      %59 = sbr.rel (0) target = $region45
    $region44: #{tpu_custom_call.1} parent=1 // pred_region
      %60 = dma.done [#allocation4], 2304
    $region45: #{tpu_custom_call.1} parent=1 // pred_fallthru
      _
    // Predicated region
    $region46: #{tpu_custom_call.1} parent=1 // pred_check
      _
    $region47: #{tpu_custom_call.1} parent=1 // pred_check_branch
      %62 = sbr.rel (0) target = $region49
    $region48: #{tpu_custom_call.1} parent=1 // pred_region
      %63 = dma.done [#allocation7], 4608
    $region49: #{tpu_custom_call.1} parent=1 // pred_fallthru
      _
    %v65 = vld [vmem:[%s1] sm:$0xf]
    %v66 = vld [vmem:[#allocation3] sm:$0xff]
    %v67 = vld [vmem:[#allocation3 + $0x8] sm:$0xff]
    %v68 = vld [vmem:[#allocation3 + $0x10] sm:$0xff]
    %v69 = vld [vmem:[#allocation3 + $0x18] sm:$0xff]
    %v70 = vld [vmem:[#allocation3 + $0x20] sm:$0xff]
    %v71 = vld [vmem:[#allocation3 + $0x28] sm:$0xff]
    %v72 = vld [vmem:[#allocation3 + $0x30] sm:$0xff]
    %v73 = vld [vmem:[#allocation3 + $0x38] sm:$0xff]
    %v74 = vld [vmem:[#allocation3 + $0x40] sm:$0xff]
    %v75 = vld [vmem:[#allocation3 + $0x48] sm:$0xff]
    %v76 = vld [vmem:[#allocation3 + $0x50] sm:$0xff]
    %v77 = vld [vmem:[#allocation3 + $0x58] sm:$0xff]
    %v78 = vld [vmem:[#allocation3 + $0x60] sm:$0xff]
    %v79 = vld [vmem:[#allocation3 + $0x68] sm:$0xff]
    %v80 = vld [vmem:[#allocation3 + $0x70] sm:$0xff]
    %v81 = vld [vmem:[#allocation3 + $0x78] sm:$0xff]
    %v82 = vld [vmem:[#allocation3 + $0x80] sm:$0xff]
    %v83 = vld [vmem:[#allocation3 + $0x88] sm:$0xff]
    %v84 = vld [vmem:[%s2] sm:$0xff]
    %v85 = vld [vmem:[%s3] sm:$0xff]
    %v86 = vld [vmem:[%s4] sm:$0xff]
    %88 = vset.pattern.permute.xlu0 0
    %89 = vperm.xlu0 %88, %v84
    %v90 = vpop.permute.xlu0 %89
    %v110 = vunpack.c.l.b16 %v66
    %v111 = vunpack.c.h.b16 %v66
    %v112 = vunpack.c.l.b16 %v67
    %v113 = vunpack.c.h.b16 %v67
    %v114 = vunpack.c.l.b16 %v68
    %v115 = vunpack.c.h.b16 %v68
    %v116 = vunpack.c.l.b16 %v69
    %v117 = vunpack.c.h.b16 %v69
    %v118 = vunpack.c.l.b16 %v70
    %v119 = vunpack.c.h.b16 %v70
    %v120 = vunpack.c.l.b16 %v71
    %v121 = vunpack.c.h.b16 %v71
    %v122 = vunpack.c.l.b16 %v72
    %v123 = vunpack.c.h.b16 %v72
    %v124 = vunpack.c.l.b16 %v73
    %v125 = vunpack.c.h.b16 %v73
    %v126 = vunpack.c.l.b16 %v74
    %v127 = vunpack.c.h.b16 %v74
    %v128 = vunpack.c.l.b16 %v75
    %v129 = vunpack.c.h.b16 %v75
    %v130 = vunpack.c.l.b16 %v76
    %v131 = vunpack.c.h.b16 %v76
    %v132 = vunpack.c.l.b16 %v77
    %v133 = vunpack.c.h.b16 %v77
    %v134 = vunpack.c.l.b16 %v78
    %v135 = vunpack.c.h.b16 %v78
    %v136 = vunpack.c.l.b16 %v79
    %v137 = vunpack.c.h.b16 %v79
    %v138 = vunpack.c.l.b16 %v80
    %v139 = vunpack.c.h.b16 %v80
    %v140 = vunpack.c.l.b16 %v81
    %v141 = vunpack.c.h.b16 %v81
    %v142 = vunpack.c.l.b16 %v82
    %v143 = vunpack.c.h.b16 %v82
    %v144 = vunpack.c.l.b16 %v83
    %v145 = vunpack.c.h.b16 %v83
    %v146 = vpack.c.b16 %v114, %v110
    %v147 = vpack.c.b16 %v115, %v111
    %v148 = vpack.c.b16 %v116, %v112
    %v149 = vpack.c.b16 %v117, %v113
    %v150 = vpack.c.b16 %v122, %v118
    %v151 = vpack.c.b16 %v123, %v119
    %v152 = vpack.c.b16 %v124, %v120
    %v153 = vpack.c.b16 %v125, %v121
    %v154 = vpack.c.b16 %v130, %v126
    %v155 = vpack.c.b16 %v131, %v127
    %v156 = vpack.c.b16 %v132, %v128
    %v157 = vpack.c.b16 %v133, %v129
    %v158 = vpack.c.b16 %v138, %v134
    %v159 = vpack.c.b16 %v139, %v135
    %v160 = vpack.c.b16 %v140, %v136
    %v161 = vpack.c.b16 %v141, %v137
    %v162 = vpack.c.b16 %v142, %v142
    %v163 = vpack.c.b16 %v143, %v143
    %v164 = vpack.c.b16 %v144, %v144
    %v165 = vpack.c.b16 %v145, %v145
    %vm182 = vcmask 588800
    %v184 = vsel %vm182, %v65, 0
    %vm186 = vcmask 1043456
    %v188 = vsel %vm186, %v162, 0
    %v191 = vsel %vm186, %v163, 0
    %v194 = vsel %vm186, %v164, 0
    %v197 = vsel %vm186, %v165, 0
    %199 = vmatprep.subr.bf16.mxu0 0
    %200 = vmatpush1.bf16.msra.mxu0 0
    %201 = vmatprep.subr.bf16.mxu0 0
    %202 = vmatpush1.bf16.msra.mxu0 0
    %203 = vmatprep.subr.bf16.mxu0 0
    %204 = vmatpush1.bf16.msra.mxu0 0
    %205 = vmatprep.subr.bf16.mxu0 %v191
    %206 = vmatpush1.bf16.msra.mxu0 %v188
    %207 = vmatprep.subr.bf16.mxu0 %v159
    %208 = vmatpush1.bf16.msra.mxu0 %v158
    %209 = vmatprep.subr.bf16.mxu0 %v155
    %210 = vmatpush1.bf16.msra.mxu0 %v154
    %211 = vmatprep.subr.bf16.mxu0 %v151
    %212 = vmatpush1.bf16.msra.mxu0 %v150
    %213 = vmatprep.subr.bf16.mxu0 %v147
    %214 = vmatpush1.bf16.msra.mxu0 %v146
    %215 = vmatprep.subr.bf16.mxu0 0
    %216 = vmatpush2.bf16.msra.mxu0 0
    %217 = vmatprep.subr.bf16.mxu0 0
    %218 = vmatpush2.bf16.msra.mxu0 0
    %219 = vmatprep.subr.bf16.mxu0 0
    %220 = vmatpush2.bf16.msra.mxu0 0
    %221 = vmatprep.subr.bf16.mxu0 0
    %222 = vmatpush2.bf16.msra.mxu0 0
    %223 = vmatprep.subr.bf16.mxu0 0
    %224 = vmatpush2.bf16.msra.mxu0 0
    %225 = vmatprep.subr.bf16.mxu0 0
    %226 = vmatpush2.bf16.msra.mxu0 0
    %227 = vmatprep.subr.bf16.mxu0 0
    %228 = vmatpush2.bf16.msra.mxu0 0
    %229 = vmatprep.subr.bf16.mxu0 0
    %230 = vmatpush2.bf16.msra.mxu0 0
    %231 = vmatprep.mubr.bf16.mxu0 0
    %232 = vmatmul.mubr.bf16.gmra.mxu0 %v184
    %v233 = vpop.f32.mrf.mxu0
    %v234 = vadd.f32 %v90, %v233
    %v235 = vpop.f32.mrf.mxu0
    %v236 = vadd.f32 %v90, %v235
    %v237 = vpop.f32.mrf.mxu0
    %v238 = vpop.f32.mrf.mxu0
    %239 = vdwg.mxu0
    %240 = vmatprep.subr.bf16.mxu0 0
    %241 = vmatpush1.bf16.msra.mxu0 0
    %242 = vmatprep.subr.bf16.mxu0 0
    %243 = vmatpush1.bf16.msra.mxu0 0
    %244 = vmatprep.subr.bf16.mxu0 0
    %245 = vmatpush1.bf16.msra.mxu0 0
    %246 = vmatprep.subr.bf16.mxu0 %v197
    %247 = vmatpush1.bf16.msra.mxu0 %v194
    %248 = vmatprep.subr.bf16.mxu0 %v161
    %249 = vmatpush1.bf16.msra.mxu0 %v160
    %250 = vmatprep.subr.bf16.mxu0 %v157
    %251 = vmatpush1.bf16.msra.mxu0 %v156
    %252 = vmatprep.subr.bf16.mxu0 %v153
    %253 = vmatpush1.bf16.msra.mxu0 %v152
    %254 = vmatprep.subr.bf16.mxu0 %v149
    %255 = vmatpush1.bf16.msra.mxu0 %v148
    %256 = vmatprep.subr.bf16.mxu0 0
    %257 = vmatpush2.bf16.msra.mxu0 0
    %258 = vmatprep.subr.bf16.mxu0 0
    %259 = vmatpush2.bf16.msra.mxu0 0
    %260 = vmatprep.subr.bf16.mxu0 0
    %261 = vmatpush2.bf16.msra.mxu0 0
    %262 = vmatprep.subr.bf16.mxu0 0
    %263 = vmatpush2.bf16.msra.mxu0 0
    %264 = vmatprep.subr.bf16.mxu0 0
    %265 = vmatpush2.bf16.msra.mxu0 0
    %266 = vmatprep.subr.bf16.mxu0 0
    %267 = vmatpush2.bf16.msra.mxu0 0
    %268 = vmatprep.subr.bf16.mxu0 0
    %269 = vmatpush2.bf16.msra.mxu0 0
    %270 = vmatprep.subr.bf16.mxu0 0
    %271 = vmatpush2.bf16.msra.mxu0 0
    %272 = vmatprep.mubr.bf16.mxu0 0
    %273 = vmatmul.mubr.bf16.gmra.mxu0 %v184
    %v274 = vpop.f32.mrf.mxu0
    %v275 = vadd.f32 %v90, %v274
    %v276 = vpop.f32.mrf.mxu0
    %v277 = vadd.f32 %v90, %v276
    %v278 = vpop.f32.mrf.mxu0
    %v279 = vpop.f32.mrf.mxu0
    %280 = vdwg.mxu0
    %v281 = vadd.f32 %v234, %v236
    %v282 = vadd.f32 %v281, %v275
    %v283 = vadd.f32 %v282, %v277
    %284 = vadd.xlane.f32.xlu0 %v283
    %v285 = vpop.xlane.xlu0 %284
    %v286 = vrcp.pop 512.0
    %v287 = vmul.f32 %v285, %v286
    %v288 = vsub.f32 %v234, %v287
    %v289 = vsub.f32 %v236, %v287
    %v290 = vsub.f32 %v275, %v287
    %v291 = vsub.f32 %v277, %v287
    %v292 = vmul.f32 %v288, %v288
    %v293 = vmul.f32 %v289, %v289
    %v294 = vmul.f32 %v290, %v290
    %v295 = vmul.f32 %v291, %v291
    %v296 = vadd.f32 %v292, %v293
    %v297 = vadd.f32 %v296, %v294
    %v298 = vadd.f32 %v297, %v295
    %299 = vadd.xlane.f32.xlu0 %v298
    %v300 = vpop.xlane.xlu0 %299
    %v301 = vmul.f32 %v300, %v286
    %v302 = vadd.f32 %v301, 1e-05
    %v303 = vrsqrt.pop %v302
    %v304 = vmul.f32 %v303, %v85
    %306 = vset.pattern.permute.xlu0 0
    %307 = vperm.xlu0 %306, %v304
    %v308 = vpop.permute.xlu0 %307
    %v310 = vmul.f32 %v288, %v308
    %v311 = vmul.f32 %v289, %v308
    %v312 = vmul.f32 %v290, %v308
    %v313 = vmul.f32 %v291, %v308
    %315 = vset.pattern.permute.xlu0 0
    %316 = vperm.xlu0 %315, %v86
    %v317 = vpop.permute.xlu0 %316
    %v319 = vadd.f32 %v310, %v317
    %v320 = vadd.f32 %v311, %v317
    %v321 = vadd.f32 %v312, %v317
    %v322 = vadd.f32 %v313, %v317
    %v323 = vmax.f32 %v319, 0.0
    %v324 = vmax.f32 %v320, 0.0
    %v325 = vmax.f32 %v321, 0.0
    %v326 = vmax.f32 %v322, 0.0
    %327 = vrot.lane.b32.xlu0 %v323, 17
    %v328 = vpop.permute.xlu0 %327
    %329 = vrot.lane.b32.xlu0 %v324, 17
    %v330 = vpop.permute.xlu0 %329
    %331 = vrot.lane.b32.xlu0 %v325, 17
    %v332 = vpop.permute.xlu0 %331
    %333 = vrot.lane.b32.xlu0 %v326, 17
    %v334 = vpop.permute.xlu0 %333
    %v335 = vlaneseq
    %v336 = vand.u32 %v335, 127
    %vm337 = vcmp.lt.s32.totalorder %v336, 17
    %v338 = vsel %vm337, %v332, %v334
    %v339 = vsel %vm337, %v330, %v332
    %v340 = vsel %vm337, %v328, %v330
    %v341 = vsel %vm337, %v334, %v328
    %v342 = vld [vmem:[#allocation6] sm:$0xff]
    %v343 = vld [vmem:[#allocation6 + $0x8] sm:$0xff]
    %v344 = vld [vmem:[#allocation6 + $0x10] sm:$0xff]
    %v345 = vld [vmem:[#allocation6 + $0x18] sm:$0xff]
    %v346 = vmul.f32 %v341, %v342
    %v347 = vmul.f32 %v340, %v343
    %v348 = vmul.f32 %v339, %v344
    %v349 = vmul.f32 %v338, %v345
    %350 = vst [vmem:[#allocation2] sm:$0xff] %v346
    %351 = vst [vmem:[#allocation2 + $0x8] sm:$0xff] %v347
    %352 = vst [vmem:[#allocation2 + $0x10] sm:$0xff] %v348
    %353 = vst [vmem:[#allocation2 + $0x18] sm:$0xff] %v349
    %354 = vrot.lane.b32.xlu0 %v323, 16
    %v355 = vpop.permute.xlu0 %354
    %356 = vrot.lane.b32.xlu0 %v324, 16
    %v357 = vpop.permute.xlu0 %356
    %358 = vrot.lane.b32.xlu0 %v325, 16
    %v359 = vpop.permute.xlu0 %358
    %360 = vrot.lane.b32.xlu0 %v326, 16
    %v361 = vpop.permute.xlu0 %360
    %vm362 = vcmp.lt.s32.totalorder %v336, 16
    %v363 = vsel %vm362, %v359, %v361
    %v364 = vsel %vm362, %v357, %v359
    %v365 = vsel %vm362, %v355, %v357
    %v366 = vsel %vm362, %v361, %v355
    %s367 = scalar_lea.vmem [#allocation6], 32
    %v368 = vld [vmem:[%s367] sm:$0xff]
    %v369 = vld [vmem:[%s367 + $0x8] sm:$0xff]
    %v370 = vld [vmem:[%s367 + $0x10] sm:$0xff]
    %v371 = vld [vmem:[%s367 + $0x18] sm:$0xff]
    %v372 = vmul.f32 %v366, %v368
    %v373 = vmul.f32 %v365, %v369
    %v374 = vmul.f32 %v364, %v370
    %v375 = vmul.f32 %v363, %v371
    %376 = vst [vmem:[#allocation2 + $0x20] sm:$0xff] %v372
    %377 = vst [vmem:[#allocation2 + $0x28] sm:$0xff] %v373
    %378 = vst [vmem:[#allocation2 + $0x30] sm:$0xff] %v374
    %379 = vst [vmem:[#allocation2 + $0x38] sm:$0xff] %v375
    %380 = vrot.lane.b32.xlu0 %v323, 15
    %v381 = vpop.permute.xlu0 %380
    %382 = vrot.lane.b32.xlu0 %v324, 15
    %v383 = vpop.permute.xlu0 %382
    %384 = vrot.lane.b32.xlu0 %v325, 15
    %v385 = vpop.permute.xlu0 %384
    %386 = vrot.lane.b32.xlu0 %v326, 15
    %v387 = vpop.permute.xlu0 %386
    %vm388 = vcmp.lt.s32.totalorder %v336, 15
    %v389 = vsel %vm388, %v385, %v387
    %v390 = vsel %vm388, %v383, %v385
    %v391 = vsel %vm388, %v381, %v383
    %v392 = vsel %vm388, %v387, %v381
    %s393 = scalar_lea.vmem [#allocation6], 64
    %v394 = vld [vmem:[%s393] sm:$0xff]
    %v395 = vld [vmem:[%s393 + $0x8] sm:$0xff]
    %v396 = vld [vmem:[%s393 + $0x10] sm:$0xff]
    %v397 = vld [vmem:[%s393 + $0x18] sm:$0xff]
    %v398 = vmul.f32 %v392, %v394
    %v399 = vmul.f32 %v391, %v395
    %v400 = vmul.f32 %v390, %v396
    %v401 = vmul.f32 %v389, %v397
    %402 = vst [vmem:[#allocation2 + $0x40] sm:$0xff] %v398
    %403 = vst [vmem:[#allocation2 + $0x48] sm:$0xff] %v399
    %404 = vst [vmem:[#allocation2 + $0x50] sm:$0xff] %v400
    %405 = vst [vmem:[#allocation2 + $0x58] sm:$0xff] %v401
    %406 = vrot.lane.b32.xlu0 %v323, 1
    %v407 = vpop.permute.xlu0 %406
    %408 = vrot.lane.b32.xlu0 %v324, 1
    %v409 = vpop.permute.xlu0 %408
    %410 = vrot.lane.b32.xlu0 %v325, 1
    %v411 = vpop.permute.xlu0 %410
    %412 = vrot.lane.b32.xlu0 %v326, 1
    %v413 = vpop.permute.xlu0 %412
    %vm414 = vcmp.lt.s32.totalorder %v336, 1
    %v415 = vsel %vm414, %v411, %v413
    %v416 = vsel %vm414, %v409, %v411
    %v417 = vsel %vm414, %v407, %v409
    %v418 = vsel %vm414, %v413, %v407
    %s419 = scalar_lea.vmem [#allocation6], 96
    %v420 = vld [vmem:[%s419] sm:$0xff]
    %v421 = vld [vmem:[%s419 + $0x8] sm:$0xff]
    %v422 = vld [vmem:[%s419 + $0x10] sm:$0xff]
    %v423 = vld [vmem:[%s419 + $0x18] sm:$0xff]
    %v424 = vmul.f32 %v418, %v420
    %v425 = vmul.f32 %v417, %v421
    %v426 = vmul.f32 %v416, %v422
    %v427 = vmul.f32 %v415, %v423
    %428 = vst [vmem:[#allocation2 + $0x60] sm:$0xff] %v424
    %429 = vst [vmem:[#allocation2 + $0x68] sm:$0xff] %v425
    %430 = vst [vmem:[#allocation2 + $0x70] sm:$0xff] %v426
    %431 = vst [vmem:[#allocation2 + $0x78] sm:$0xff] %v427
    %s432 = scalar_lea.vmem [#allocation6], 128
    %v433 = vld [vmem:[%s432] sm:$0xff]
    %v434 = vld [vmem:[%s432 + $0x8] sm:$0xff]
    %v435 = vld [vmem:[%s432 + $0x10] sm:$0xff]
    %v436 = vld [vmem:[%s432 + $0x18] sm:$0xff]
    %v437 = vmul.f32 %v323, %v433
    %v438 = vmul.f32 %v324, %v434
    %v439 = vmul.f32 %v325, %v435
    %v440 = vmul.f32 %v326, %v436
    %441 = vst [vmem:[#allocation2 + $0x80] sm:$0xff] %v437
    %442 = vst [vmem:[#allocation2 + $0x88] sm:$0xff] %v438
    %443 = vst [vmem:[#allocation2 + $0x90] sm:$0xff] %v439
    %444 = vst [vmem:[#allocation2 + $0x98] sm:$0xff] %v440
    %445 = vrot.lane.b32.xlu0 %v323, 127
    %v446 = vpop.permute.xlu0 %445
    %447 = vrot.lane.b32.xlu0 %v324, 127
    %v448 = vpop.permute.xlu0 %447
    %449 = vrot.lane.b32.xlu0 %v325, 127
    %v450 = vpop.permute.xlu0 %449
    %451 = vrot.lane.b32.xlu0 %v326, 127
    %v452 = vpop.permute.xlu0 %451
    %vm453 = vcmp.lt.s32.totalorder %v336, 127
    %v454 = vsel %vm453, %v450, %v452
    %v455 = vsel %vm453, %v448, %v450
    %v456 = vsel %vm453, %v446, %v448
    %v457 = vsel %vm453, %v452, %v446
    %s458 = scalar_lea.vmem [#allocation6], 160
    %v459 = vld [vmem:[%s458] sm:$0xff]
    %v460 = vld [vmem:[%s458 + $0x8] sm:$0xff]
    %v461 = vld [vmem:[%s458 + $0x10] sm:$0xff]
    %v462 = vld [vmem:[%s458 + $0x18] sm:$0xff]
    %v463 = vmul.f32 %v456, %v459
    %v464 = vmul.f32 %v455, %v460
    %v465 = vmul.f32 %v454, %v461
    %v466 = vmul.f32 %v457, %v462
    %467 = vst [vmem:[#allocation2 + $0xa0] sm:$0xff] %v463
    %468 = vst [vmem:[#allocation2 + $0xa8] sm:$0xff] %v464
    %469 = vst [vmem:[#allocation2 + $0xb0] sm:$0xff] %v465
    %470 = vst [vmem:[#allocation2 + $0xb8] sm:$0xff] %v466
    %471 = vrot.lane.b32.xlu0 %v323, 113
    %v472 = vpop.permute.xlu0 %471
    %473 = vrot.lane.b32.xlu0 %v324, 113
    %v474 = vpop.permute.xlu0 %473
    %475 = vrot.lane.b32.xlu0 %v325, 113
    %v476 = vpop.permute.xlu0 %475
    %477 = vrot.lane.b32.xlu0 %v326, 113
    %v478 = vpop.permute.xlu0 %477
    %vm479 = vcmp.lt.s32.totalorder %v336, 113
    %v480 = vsel %vm479, %v476, %v478
    %v481 = vsel %vm479, %v474, %v476
    %v482 = vsel %vm479, %v472, %v474
    %v483 = vsel %vm479, %v478, %v472
    %s484 = scalar_lea.vmem [#allocation6], 192
    %v485 = vld [vmem:[%s484] sm:$0xff]
    %v486 = vld [vmem:[%s484 + $0x8] sm:$0xff]
    %v487 = vld [vmem:[%s484 + $0x10] sm:$0xff]
    %v488 = vld [vmem:[%s484 + $0x18] sm:$0xff]
    %v489 = vmul.f32 %v482, %v485
    %v490 = vmul.f32 %v481, %v486
    %v491 = vmul.f32 %v480, %v487
    %v492 = vmul.f32 %v483, %v488
    %493 = vst [vmem:[#allocation2 + $0xc0] sm:$0xff] %v489
    %494 = vst [vmem:[#allocation2 + $0xc8] sm:$0xff] %v490
    %495 = vst [vmem:[#allocation2 + $0xd0] sm:$0xff] %v491
    %496 = vst [vmem:[#allocation2 + $0xd8] sm:$0xff] %v492
    %497 = vrot.lane.b32.xlu0 %v323, 112
    %v498 = vpop.permute.xlu0 %497
    %499 = vrot.lane.b32.xlu0 %v324, 112
    %v500 = vpop.permute.xlu0 %499
    %501 = vrot.lane.b32.xlu0 %v325, 112
    %v502 = vpop.permute.xlu0 %501
    %503 = vrot.lane.b32.xlu0 %v326, 112
    %v504 = vpop.permute.xlu0 %503
    %vm505 = vcmp.lt.s32.totalorder %v336, 112
    %v506 = vsel %vm505, %v502, %v504
    %v507 = vsel %vm505, %v500, %v502
    %v508 = vsel %vm505, %v498, %v500
    %v509 = vsel %vm505, %v504, %v498
    %s510 = scalar_lea.vmem [#allocation6], 224
    %v511 = vld [vmem:[%s510] sm:$0xff]
    %v512 = vld [vmem:[%s510 + $0x8] sm:$0xff]
    %v513 = vld [vmem:[%s510 + $0x10] sm:$0xff]
    %v514 = vld [vmem:[%s510 + $0x18] sm:$0xff]
    %v515 = vmul.f32 %v508, %v511
    %v516 = vmul.f32 %v507, %v512
    %v517 = vmul.f32 %v506, %v513
    %v518 = vmul.f32 %v509, %v514
    %519 = vst [vmem:[#allocation2 + $0xe0] sm:$0xff] %v515
    %520 = vst [vmem:[#allocation2 + $0xe8] sm:$0xff] %v516
    %521 = vst [vmem:[#allocation2 + $0xf0] sm:$0xff] %v517
    %522 = vst [vmem:[#allocation2 + $0xf8] sm:$0xff] %v518
    %523 = vrot.lane.b32.xlu0 %v323, 111
    %v524 = vpop.permute.xlu0 %523
    %525 = vrot.lane.b32.xlu0 %v324, 111
    %v526 = vpop.permute.xlu0 %525
    %527 = vrot.lane.b32.xlu0 %v325, 111
    %v528 = vpop.permute.xlu0 %527
    %529 = vrot.lane.b32.xlu0 %v326, 111
    %v530 = vpop.permute.xlu0 %529
    %vm531 = vcmp.lt.s32.totalorder %v336, 111
    %v532 = vsel %vm531, %v528, %v530
    %v533 = vsel %vm531, %v526, %v528
    %v534 = vsel %vm531, %v524, %v526
    %v535 = vsel %vm531, %v530, %v524
    %s536 = scalar_lea.vmem [#allocation6], 256
    %v537 = vld [vmem:[%s536] sm:$0xff]
    %v538 = vld [vmem:[%s536 + $0x8] sm:$0xff]
    %v539 = vld [vmem:[%s536 + $0x10] sm:$0xff]
    %v540 = vld [vmem:[%s536 + $0x18] sm:$0xff]
    %v541 = vmul.f32 %v534, %v537
    %v542 = vmul.f32 %v533, %v538
    %v543 = vmul.f32 %v532, %v539
    %v544 = vmul.f32 %v535, %v540
    %545 = vst [vmem:[#allocation2 + $0x100] sm:$0xff] %v541
    %546 = vst [vmem:[#allocation2 + $0x108] sm:$0xff] %v542
    %547 = vst [vmem:[#allocation2 + $0x110] sm:$0xff] %v543
    %548 = vst [vmem:[#allocation2 + $0x118] sm:$0xff] %v544
    %v549 = vld [vmem:[%s5] sm:$0xf]
    %v550 = vld [vmem:[#allocation2] sm:$0xff]
    %v551 = vld [vmem:[#allocation2 + $0x8] sm:$0xff]
    %v552 = vld [vmem:[#allocation2 + $0x10] sm:$0xff]
    %v553 = vld [vmem:[#allocation2 + $0x18] sm:$0xff]
    %v554 = vld [vmem:[#allocation2 + $0x20] sm:$0xff]
    %v555 = vld [vmem:[#allocation2 + $0x28] sm:$0xff]
    %v556 = vld [vmem:[#allocation2 + $0x30] sm:$0xff]
    %v557 = vld [vmem:[#allocation2 + $0x38] sm:$0xff]
    %v558 = vld [vmem:[#allocation2 + $0x40] sm:$0xff]
    %v559 = vld [vmem:[#allocation2 + $0x48] sm:$0xff]
    %v560 = vld [vmem:[#allocation2 + $0x50] sm:$0xff]
    %v561 = vld [vmem:[#allocation2 + $0x58] sm:$0xff]
    %v562 = vld [vmem:[#allocation2 + $0x60] sm:$0xff]
    %v563 = vld [vmem:[#allocation2 + $0x68] sm:$0xff]
    %v564 = vld [vmem:[#allocation2 + $0x70] sm:$0xff]
    %v565 = vld [vmem:[#allocation2 + $0x78] sm:$0xff]
    %v566 = vld [vmem:[#allocation2 + $0x80] sm:$0xff]
    %v567 = vld [vmem:[#allocation2 + $0x88] sm:$0xff]
    %v568 = vld [vmem:[#allocation2 + $0x90] sm:$0xff]
    %v569 = vld [vmem:[#allocation2 + $0x98] sm:$0xff]
    %v570 = vld [vmem:[#allocation2 + $0xa0] sm:$0xff]
    %v571 = vld [vmem:[#allocation2 + $0xa8] sm:$0xff]
    %v572 = vld [vmem:[#allocation2 + $0xb0] sm:$0xff]
    %v573 = vld [vmem:[#allocation2 + $0xb8] sm:$0xff]
    %v574 = vld [vmem:[#allocation2 + $0xc0] sm:$0xff]
    %v575 = vld [vmem:[#allocation2 + $0xc8] sm:$0xff]
    %v576 = vld [vmem:[#allocation2 + $0xd0] sm:$0xff]
    %v577 = vld [vmem:[#allocation2 + $0xd8] sm:$0xff]
    %v578 = vld [vmem:[#allocation2 + $0xe0] sm:$0xff]
    %v579 = vld [vmem:[#allocation2 + $0xe8] sm:$0xff]
    %v580 = vld [vmem:[#allocation2 + $0xf0] sm:$0xff]
    %v581 = vld [vmem:[#allocation2 + $0xf8] sm:$0xff]
    %v582 = vld [vmem:[#allocation2 + $0x100] sm:$0xff]
    %v583 = vld [vmem:[#allocation2 + $0x108] sm:$0xff]
    %v584 = vld [vmem:[#allocation2 + $0x110] sm:$0xff]
    %v585 = vld [vmem:[#allocation2 + $0x118] sm:$0xff]
    %v586 = vpack.c.bf16 %v554, %v550
    %v587 = vpack.c.bf16 %v555, %v551
    %v588 = vpack.c.bf16 %v556, %v552
    %v589 = vpack.c.bf16 %v557, %v553
    %v590 = vpack.c.bf16 %v562, %v558
    %v591 = vpack.c.bf16 %v563, %v559
    %v592 = vpack.c.bf16 %v564, %v560
    %v593 = vpack.c.bf16 %v565, %v561
    %v594 = vpack.c.bf16 %v570, %v566
    %v595 = vpack.c.bf16 %v571, %v567
    %v596 = vpack.c.bf16 %v572, %v568
    %v597 = vpack.c.bf16 %v573, %v569
    %v598 = vpack.c.bf16 %v578, %v574
    %v599 = vpack.c.bf16 %v579, %v575
    %v600 = vpack.c.bf16 %v580, %v576
    %v601 = vpack.c.bf16 %v581, %v577
    %v602 = vpack.c.bf16 %v582, %v582
    %v603 = vpack.c.bf16 %v583, %v583
    %v604 = vpack.c.bf16 %v584, %v584
    %v605 = vpack.c.bf16 %v585, %v585
    %v606 = vld [vmem:[%s6] sm:$0xff]
    %v607 = vld [vmem:[%s7] sm:$0xff]
    %v608 = vld [vmem:[%s8] sm:$0xff]
    %610 = vset.pattern.permute.xlu0 0
    %611 = vperm.xlu0 %610, %v606
    %v612 = vpop.permute.xlu0 %611
    %v615 = vsel %vm182, %v549, 0
    %v618 = vsel %vm186, %v602, 0
    %v621 = vsel %vm186, %v603, 0
    %v624 = vsel %vm186, %v604, 0
    %v627 = vsel %vm186, %v605, 0
    %629 = vmatprep.subr.bf16.mxu0 0
    %630 = vmatpush1.bf16.msra.mxu0 0
    %631 = vmatprep.subr.bf16.mxu0 0
    %632 = vmatpush1.bf16.msra.mxu0 0
    %633 = vmatprep.subr.bf16.mxu0 0
    %634 = vmatpush1.bf16.msra.mxu0 0
    %635 = vmatprep.subr.bf16.mxu0 %v621
    %636 = vmatpush1.bf16.msra.mxu0 %v618
    %637 = vmatprep.subr.bf16.mxu0 %v599
    %638 = vmatpush1.bf16.msra.mxu0 %v598
    %639 = vmatprep.subr.bf16.mxu0 %v595
    %640 = vmatpush1.bf16.msra.mxu0 %v594
    %641 = vmatprep.subr.bf16.mxu0 %v591
    %642 = vmatpush1.bf16.msra.mxu0 %v590
    %643 = vmatprep.subr.bf16.mxu0 %v587
    %644 = vmatpush1.bf16.msra.mxu0 %v586
    %645 = vmatprep.subr.bf16.mxu0 0
    %646 = vmatpush2.bf16.msra.mxu0 0
    %647 = vmatprep.subr.bf16.mxu0 0
    %648 = vmatpush2.bf16.msra.mxu0 0
    %649 = vmatprep.subr.bf16.mxu0 0
    %650 = vmatpush2.bf16.msra.mxu0 0
    %651 = vmatprep.subr.bf16.mxu0 0
    %652 = vmatpush2.bf16.msra.mxu0 0
    %653 = vmatprep.subr.bf16.mxu0 0
    %654 = vmatpush2.bf16.msra.mxu0 0
    %655 = vmatprep.subr.bf16.mxu0 0
    %656 = vmatpush2.bf16.msra.mxu0 0
    %657 = vmatprep.subr.bf16.mxu0 0
    %658 = vmatpush2.bf16.msra.mxu0 0
    %659 = vmatprep.subr.bf16.mxu0 0
    %660 = vmatpush2.bf16.msra.mxu0 0
    %661 = vmatprep.mubr.bf16.mxu0 0
    %662 = vmatmul.mubr.bf16.gmra.mxu0 %v615
    %v663 = vpop.f32.mrf.mxu0
    %v664 = vadd.f32 %v612, %v663
    %v665 = vpop.f32.mrf.mxu0
    %v666 = vadd.f32 %v612, %v665
    %v667 = vpop.f32.mrf.mxu0
    %v668 = vpop.f32.mrf.mxu0
    %669 = vdwg.mxu0
    %670 = vmatprep.subr.bf16.mxu0 0
    %671 = vmatpush1.bf16.msra.mxu0 0
    %672 = vmatprep.subr.bf16.mxu0 0
    %673 = vmatpush1.bf16.msra.mxu0 0
    %674 = vmatprep.subr.bf16.mxu0 0
    %675 = vmatpush1.bf16.msra.mxu0 0
    %676 = vmatprep.subr.bf16.mxu0 %v627
    %677 = vmatpush1.bf16.msra.mxu0 %v624
    %678 = vmatprep.subr.bf16.mxu0 %v601
    %679 = vmatpush1.bf16.msra.mxu0 %v600
    %680 = vmatprep.subr.bf16.mxu0 %v597
    %681 = vmatpush1.bf16.msra.mxu0 %v596
    %682 = vmatprep.subr.bf16.mxu0 %v593
    %683 = vmatpush1.bf16.msra.mxu0 %v592
    %684 = vmatprep.subr.bf16.mxu0 %v589
    %685 = vmatpush1.bf16.msra.mxu0 %v588
    %686 = vmatprep.subr.bf16.mxu0 0
    %687 = vmatpush2.bf16.msra.mxu0 0
    %688 = vmatprep.subr.bf16.mxu0 0
    %689 = vmatpush2.bf16.msra.mxu0 0
    %690 = vmatprep.subr.bf16.mxu0 0
    %691 = vmatpush2.bf16.msra.mxu0 0
    %692 = vmatprep.subr.bf16.mxu0 0
    %693 = vmatpush2.bf16.msra.mxu0 0
    %694 = vmatprep.subr.bf16.mxu0 0
    %695 = vmatpush2.bf16.msra.mxu0 0
    %696 = vmatprep.subr.bf16.mxu0 0
    %697 = vmatpush2.bf16.msra.mxu0 0
    %698 = vmatprep.subr.bf16.mxu0 0
    %699 = vmatpush2.bf16.msra.mxu0 0
    %700 = vmatprep.subr.bf16.mxu0 0
    %701 = vmatpush2.bf16.msra.mxu0 0
    %702 = vmatprep.mubr.bf16.mxu0 0
    %703 = vmatmul.mubr.bf16.gmra.mxu0 %v615
    %v704 = vpop.f32.mrf.mxu0
    %v705 = vadd.f32 %v612, %v704
    %v706 = vpop.f32.mrf.mxu0
    %v707 = vadd.f32 %v612, %v706
    %v708 = vpop.f32.mrf.mxu0
    %v709 = vpop.f32.mrf.mxu0
    %710 = vdwg.mxu0
    %v711 = vadd.f32 %v664, %v666
    %v712 = vadd.f32 %v711, %v705
    %v713 = vadd.f32 %v712, %v707
    %714 = vadd.xlane.f32.xlu0 %v713
    %v715 = vpop.xlane.xlu0 %714
    %v716 = vmul.f32 %v715, %v286
    %v717 = vsub.f32 %v664, %v716
    %v718 = vsub.f32 %v666, %v716
    %v719 = vsub.f32 %v705, %v716
    %v720 = vsub.f32 %v707, %v716
    %v721 = vmul.f32 %v717, %v717
    %v722 = vmul.f32 %v718, %v718
    %v723 = vmul.f32 %v719, %v719
    %v724 = vmul.f32 %v720, %v720
    %v725 = vadd.f32 %v721, %v722
    %v726 = vadd.f32 %v725, %v723
    %v727 = vadd.f32 %v726, %v724
    %728 = vadd.xlane.f32.xlu0 %v727
    %v729 = vpop.xlane.xlu0 %728
    %v730 = vmul.f32 %v729, %v286
    %v731 = vadd.f32 %v730, 1e-05
    %v732 = vrsqrt.pop %v731
    %v733 = vmul.f32 %v732, %v607
    %735 = vset.pattern.permute.xlu0 0
    %736 = vperm.xlu0 %735, %v733
    %v737 = vpop.permute.xlu0 %736
    %v739 = vmul.f32 %v717, %v737
    %v740 = vmul.f32 %v718, %v737
    %v741 = vmul.f32 %v719, %v737
    %v742 = vmul.f32 %v720, %v737
    %744 = vset.pattern.permute.xlu0 0
    %745 = vperm.xlu0 %744, %v608
    %v746 = vpop.permute.xlu0 %745
    %v748 = vadd.f32 %v739, %v746
    %v749 = vadd.f32 %v740, %v746
    %v750 = vadd.f32 %v741, %v746
    %v751 = vadd.f32 %v742, %v746
    %v752 = vmax.f32 %v748, 0.0
    %v753 = vmax.f32 %v749, 0.0
    %v754 = vmax.f32 %v750, 0.0
    %v755 = vmax.f32 %v751, 0.0
    %756 = vst [vmem:[#allocation8] sm:$0xff] %v752
    %757 = vst [vmem:[#allocation8 + $0x8] sm:$0xff] %v753
    %758 = vst [vmem:[#allocation8 + $0x10] sm:$0xff] %v754
    %759 = vst [vmem:[#allocation8 + $0x18] sm:$0xff] %v755
    // Predicated region
    $region50: #{tpu_custom_call.1} parent=1 // pred_check
      _
    $region51: #{tpu_custom_call.1} parent=1 // pred_check_branch
      %761 = sbr.rel (0) target = $region53
    $region52: #{tpu_custom_call.1} parent=1 // pred_region
      %s763 = ssub.s32 512, 512
      %764 = vsyncadd [#allocation5], %s763
      %s766 = sshll.u32 [#allocation8], 4
      %s767 = int_to_ptr.vmem [resolvable:$true] %s766
      %769 = dma.vmem_to_hbm [thread:$0]  %s767, 512, %s10, [#allocation5]
    $region53: #{tpu_custom_call.1} parent=1 // pred_fallthru
      _
    // Predicated region
    $region54: #{tpu_custom_call.1} parent=1 // pred_check
      _
    $region55: #{tpu_custom_call.1} parent=1 // pred_check_branch
      %771 = sbr.rel (0) target = $region57
    $region56: #{tpu_custom_call.1} parent=1 // pred_region
      %772 = dma.done [#allocation5], 512
    $region57: #{tpu_custom_call.1} parent=1 // pred_fallthru
      _
    %773 = vsyncpa [#allocation4], 1
    %774 = vsyncpa [#allocation7], 1
    %775 = vsyncpa [#allocation5], 1

</llo_original>
